<compile_context>
chip_gen: v6e
topology: v6e:2x2x1
jax: 0.10.0
libtpu: 0.0.40
codegen_flags: <defaults>
</compile_context>

<pallas_src>
import jax
import jax.numpy as jnp
from jax.experimental import pallas as pl
from jax.experimental.pallas import tpu as pltpu


_SMALL_BYTES = 512 * 1024              # below this: jnp.concatenate (launch overhead dominates)
_VMEM_LIVE_BUDGET = 20 * 1024 * 1024   # live blocks budget; conservative for v7x's 64 MiB VMEM
_VMEM_LIMIT = 32 * 1024 * 1024         # scoped VMEM to request (raises v5e's 16 MiB default)


# ----------------------------------------------------------------------------
# Same-dtype fast path: grid-free HBM->HBM slab DMA concat.
# ----------------------------------------------------------------------------
def _concat_dma_kernel(a_hbm, b_hbm, o_hbm, sem):
    c1 = a_hbm.shape[1]
    c2 = b_hbm.shape[1]
    cp_a = pltpu.make_async_copy(a_hbm, o_hbm.at[:, 0:c1, :], sem.at[0])
    cp_b = pltpu.make_async_copy(b_hbm, o_hbm.at[:, c1:c1 + c2, :], sem.at[1])
    cp_a.start()
    cp_b.start()
    cp_a.wait()
    cp_b.wait()


def _dma_concat(a, b, out_dtype):
    n, c1, hw = a.shape
    c2 = b.shape[1]
    return pl.pallas_call(
        _concat_dma_kernel,
        out_shape=jax.ShapeDtypeStruct((n, c1 + c2, hw), out_dtype),
        in_specs=[
            pl.BlockSpec(memory_space=pl.ANY),
            pl.BlockSpec(memory_space=pl.ANY),
        ],
        out_specs=pl.BlockSpec(memory_space=pl.ANY),
        scratch_shapes=[pltpu.SemaphoreType.DMA((2,))],
    )(a, b)


# ----------------------------------------------------------------------------
# Mixed-dtype fused hybrid: cast one input through VMEM, DMA the other.
# ----------------------------------------------------------------------------
def _make_fused_cast_concat_kernel(off_pass, c_pass, off_cast, c_cast, chunk, out_dtype):
    def kernel(cast_ref, pass_hbm, o_hbm, stage, out_sem, slab_sem):
        i = pl.program_id(0)
        j = pl.program_id(1)
        nj = pl.num_programs(1)
        step = i * nj + j
        total = pl.num_programs(0) * nj

        # One-time HBM->HBM slab DMA for the input that needs no cast.  It
        # overlaps with the whole pipelined cast of the other input.
        @pl.when(step == 0)
        def _():
            pltpu.make_async_copy(
                pass_hbm, o_hbm.at[:, off_pass:off_pass + c_pass, :], slab_sem
            ).start()

        # VPU cast into a channel-offset-0, lane-dense staging tile.  This is a
        # full-block store: no masked / sublane-misaligned vst.
        stage[...] = cast_ref[...].astype(out_dtype)

        # DMA the staged tile into its channel slab of the output.  The odd
        # channel offset (off_cast) is handled by the DMA engine, not by
        # vector stores, so no relayout / masked-store penalty.  The next
        # chunk's input DMA (BlockSpec pipeline) overlaps this write.
        out_cp = pltpu.make_async_copy(
            stage,
            o_hbm.at[pl.ds(i, 1), pl.ds(off_cast, c_cast), pl.ds(j * chunk, chunk)],
            out_sem,
        )
        out_cp.start()
        out_cp.wait()

        @pl.when(step == total - 1)
        def _():
            pltpu.make_async_copy(
                pass_hbm, o_hbm.at[:, off_pass:off_pass + c_pass, :], slab_sem
            ).wait()

    return kernel


def _pick_hw_chunk(hw, c_cast, in_dtype, out_dtype):
    """VMEM-budget-driven hw chunk (multiple of 128 dividing hw), or None."""
    c_pad = ((c_cast + 7) // 8) * 8  # sublane padding of the staging/input tiles
    # Live VMEM per step: double-buffered input block + one staging tile.
    per_lane = c_pad * (2 * jnp.dtype(in_dtype).itemsize + jnp.dtype(out_dtype).itemsize)
    if hw % 128 != 0:
        # Full-extent last dim is allowed by the (8,128) rule; use it if it fits.
        return hw if hw * per_lane <= _VMEM_LIVE_BUDGET else None
    m = hw // 128
    best = None
    for d in range(1, m + 1):
        if m % d == 0 and 128 * d * per_lane <= _VMEM_LIVE_BUDGET:
            best = 128 * d
    return best


def _fused_cast_concat(a, b, out_dtype, cast_is_a, chunk):
    n, c1, hw = a.shape
    c2 = b.shape[1]
    if cast_is_a:
        cast_arr, pass_arr = a, b
        c_cast, c_pass = c1, c2
        off_cast, off_pass = 0, c1
    else:
        cast_arr, pass_arr = b, a
        c_cast, c_pass = c2, c1
        off_cast, off_pass = c1, 0

    kernel = _make_fused_cast_concat_kernel(
        off_pass, c_pass, off_cast, c_cast, chunk, out_dtype)

    return pl.pallas_call(
        kernel,
        out_shape=jax.ShapeDtypeStruct((n, c1 + c2, hw), out_dtype),
        grid=(n, hw // chunk),
        in_specs=[
            # Cast input is pipelined (default depth 2; bump to
            # pipeline_mode=pl.Buffered(3) only if profiling shows exposed
            # input-DMA waits on very small per-step blocks).
            pl.BlockSpec((1, c_cast, chunk), lambda i, j: (i, 0, j)),
            # Pass-through input stays in HBM (slab DMA only, no VMEM trip).
            pl.BlockSpec(memory_space=pl.ANY),
        ],
        out_specs=pl.BlockSpec(memory_space=pl.ANY),
        scratch_shapes=[
            pltpu.VMEM((1, c_cast, chunk), out_dtype),
            pltpu.SemaphoreType.DMA(()),
            pltpu.SemaphoreType.DMA(()),
        ],
        compiler_params=pltpu.CompilerParams(
            # Kept sequential on purpose: the kernel is DMA/HBM-bound and the
            # start-once / wait-at-end slab DMA relies on in-order steps.
            dimension_semantics=("arbitrary", "arbitrary"),
            vmem_limit_bytes=_VMEM_LIMIT,
        ),
    )(cast_arr, pass_arr)


# ----------------------------------------------------------------------------
# Public wrapper: torch.cat((layer_1, layer_2), dim=1) for NCHW.
# ----------------------------------------------------------------------------
def concatenate(layer_1: jax.Array, layer_2: jax.Array) -> jax.Array:
    assert layer_1.ndim == 4 and layer_2.ndim == 4
    n, c1, h, w = layer_1.shape
    n2, c2, h2, w2 = layer_2.shape
    assert (n, h, w) == (n2, h2, w2), "non-channel dims must match for cat(dim=1)"
    out_dtype = jnp.result_type(layer_1.dtype, layer_2.dtype)
    hw = h * w
    out_bytes = n * (c1 + c2) * hw * jnp.dtype(out_dtype).itemsize

    # Small-size escape hatch: launch/DMA-descriptor overhead dominates.
    if out_bytes < _SMALL_BYTES:
        return jnp.concatenate(
            (layer_1.astype(out_dtype), layer_2.astype(out_dtype)), axis=1)

    # Lane-dense layout: fuse trailing spatial dims (contiguity-preserving
    # reshape) so the last dim maps wide onto the 128-lane axis.
    a = layer_1.reshape(n, c1, hw)
    b = layer_2.reshape(n, c2, hw)
    a_match = layer_1.dtype == out_dtype
    b_match = layer_2.dtype == out_dtype

    if a_match and b_match:
        out = _dma_concat(a, b, out_dtype)
    else:
        cast_is_a = not a_match
        if not a_match and not b_match:
            # Rare mixed-int/float promotion where both need casting: promote
            # one in the wrapper, fused kernel handles the other.
            # TODO(synk): fuse both casts into one kernel if this path matters.
            a = a.astype(out_dtype)
            cast_is_a = False
        cast_dtype = (a if cast_is_a else b).dtype
        c_cast = c1 if cast_is_a else c2
        chunk = _pick_hw_chunk(hw, c_cast, cast_dtype, out_dtype)
        if chunk is None:
            # Extremely wide channels or awkward hw: plain cast + DMA concat.
            out = _dma_concat(a.astype(out_dtype), b.astype(out_dtype), out_dtype)
        else:
            out = _fused_cast_concat(a, b, out_dtype, cast_is_a, chunk)

    return out.reshape(n, c1 + c2, h, w)


if __name__ == "__main__":
    key = jax.random.PRNGKey(0)
    k1, k2, k3, k4 = jax.random.split(key, 4)

    # 1) Small NCHW inputs consistent with the module's forward
    #    (escape-hatch path: below the Pallas size threshold).
    layer_1 = jax.random.normal(k1, (2, 4, 16, 16), dtype=jnp.float32)
    layer_2 = jax.random.normal(k2, (2, 6, 16, 16), dtype=jnp.float32)
    out = jax.block_until_ready(concatenate(layer_1, layer_2))
    ref = jnp.concatenate((layer_1, layer_2), axis=1)
    assert out.shape == (2, 10, 16, 16), out.shape
    assert jnp.array_equal(out, ref), "mismatch (small-size path)"

    # 2) Larger same-dtype inputs -> grid-free HBM->HBM DMA fast path.
    big_1 = jax.random.normal(k3, (2, 48, 64, 64), dtype=jnp.float32)
    big_2 = jax.random.normal(k4, (2, 80, 64, 64), dtype=jnp.float32)
    out2 = jax.block_until_ready(concatenate(big_1, big_2))
    ref2 = jnp.concatenate((big_1, big_2), axis=1)
    assert out2.shape == (2, 128, 64, 64)
    assert jnp.array_equal(out2, ref2), "mismatch (DMA fast path)"

    # 3) Mixed dtypes, first input needs the cast -> fused hybrid kernel.
    big_1_bf16 = big_1.astype(jnp.bfloat16)
    out3 = jax.block_until_ready(concatenate(big_1_bf16, big_2))
    ref3 = jnp.concatenate((big_1_bf16.astype(jnp.float32), big_2), axis=1)
    assert out3.dtype == jnp.float32
    assert jnp.array_equal(out3, ref3), "mismatch (fused cast path, cast=layer_1)"

    # 4) Mixed dtypes, second input needs the cast (channel offset != 0 slab).
    big_2_bf16 = big_2.astype(jnp.bfloat16)
    out4 = jax.block_until_ready(concatenate(big_1, big_2_bf16))
    ref4 = jnp.concatenate((big_1, big_2_bf16.astype(jnp.float32)), axis=1)
    assert out4.dtype == jnp.float32
    assert jnp.array_equal(out4, ref4), "mismatch (fused cast path, cast=layer_2)"

    print("KERNEL_OK")
</pallas_src>

<mosaic_0001>
module attributes {stable_mosaic.version = 11 : i64} {
  func.func @_concat_dma_kernel(%arg0: memref<2x48x4096xf32, #tpu.memory_space<any>>, %arg1: memref<2x80x4096xf32, #tpu.memory_space<any>>, %arg2: memref<2x128x4096xf32, #tpu.memory_space<any>>, %arg3: memref<2x!tpu.dma_semaphore, #tpu.memory_space<semaphore_mem>>) attributes {dimension_semantics = [], scalar_prefetch = 0 : i64, scratch_operands = 1 : i64, tpu.core_type = #tpu.core_type<tc>} {
    %c0_i32 = arith.constant 0 : i32
    %c0_i32_0 = arith.constant 0 : i32
    %c0_i32_1 = arith.constant 0 : i32
    %c0_i32_2 = arith.constant 0 : i32
    %0 = tpu.memref_slice %arg2[%c0_i32_0, %c0_i32_1, %c0_i32_2] : memref<2x128x4096xf32, #tpu.memory_space<any>> -> memref<2x48x4096xf32, #tpu.memory_space<any>>
    %1 = tpu.memref_slice %arg3[%c0_i32] : memref<2x!tpu.dma_semaphore, #tpu.memory_space<semaphore_mem>> -> memref<1x!tpu.dma_semaphore, #tpu.memory_space<semaphore_mem>>
    %2 = tpu.memref_squeeze %1 : memref<1x!tpu.dma_semaphore, #tpu.memory_space<semaphore_mem>> -> memref<!tpu.dma_semaphore, #tpu.memory_space<semaphore_mem>>
    tpu.enqueue_dma source(%arg0 : memref<2x48x4096xf32, #tpu.memory_space<any>>) target(%0 : memref<2x48x4096xf32, #tpu.memory_space<any>>) target_semaphore(%2 : memref<!tpu.dma_semaphore, #tpu.memory_space<semaphore_mem>>)
    %c1_i32 = arith.constant 1 : i32
    %c0_i32_3 = arith.constant 0 : i32
    %c48_i32 = arith.constant 48 : i32
    %c0_i32_4 = arith.constant 0 : i32
    %3 = tpu.memref_slice %arg2[%c0_i32_3, %c48_i32, %c0_i32_4] : memref<2x128x4096xf32, #tpu.memory_space<any>> -> memref<2x80x4096xf32, #tpu.memory_space<any>>
    %4 = tpu.memref_slice %arg3[%c1_i32] : memref<2x!tpu.dma_semaphore, #tpu.memory_space<semaphore_mem>> -> memref<1x!tpu.dma_semaphore, #tpu.memory_space<semaphore_mem>>
    %5 = tpu.memref_squeeze %4 : memref<1x!tpu.dma_semaphore, #tpu.memory_space<semaphore_mem>> -> memref<!tpu.dma_semaphore, #tpu.memory_space<semaphore_mem>>
    tpu.enqueue_dma source(%arg1 : memref<2x80x4096xf32, #tpu.memory_space<any>>) target(%3 : memref<2x80x4096xf32, #tpu.memory_space<any>>) target_semaphore(%5 : memref<!tpu.dma_semaphore, #tpu.memory_space<semaphore_mem>>)
    %c0_i32_5 = arith.constant 0 : i32
    %c0_i32_6 = arith.constant 0 : i32
    %c0_i32_7 = arith.constant 0 : i32
    %c0_i32_8 = arith.constant 0 : i32
    %6 = tpu.memref_slice %arg2[%c0_i32_6, %c0_i32_7, %c0_i32_8] : memref<2x128x4096xf32, #tpu.memory_space<any>> -> memref<2x48x4096xf32, #tpu.memory_space<any>>
    %7 = tpu.memref_slice %arg3[%c0_i32_5] : memref<2x!tpu.dma_semaphore, #tpu.memory_space<semaphore_mem>> -> memref<1x!tpu.dma_semaphore, #tpu.memory_space<semaphore_mem>>
    %8 = tpu.memref_squeeze %7 : memref<1x!tpu.dma_semaphore, #tpu.memory_space<semaphore_mem>> -> memref<!tpu.dma_semaphore, #tpu.memory_space<semaphore_mem>>
    tpu.wait_dma2 semaphore(%8 : memref<!tpu.dma_semaphore, #tpu.memory_space<semaphore_mem>>) src(%arg0 : memref<2x48x4096xf32, #tpu.memory_space<any>>) dst(%6 : memref<2x48x4096xf32, #tpu.memory_space<any>>)
    %c1_i32_9 = arith.constant 1 : i32
    %c0_i32_10 = arith.constant 0 : i32
    %c48_i32_11 = arith.constant 48 : i32
    %c0_i32_12 = arith.constant 0 : i32
    %9 = tpu.memref_slice %arg2[%c0_i32_10, %c48_i32_11, %c0_i32_12] : memref<2x128x4096xf32, #tpu.memory_space<any>> -> memref<2x80x4096xf32, #tpu.memory_space<any>>
    %10 = tpu.memref_slice %arg3[%c1_i32_9] : memref<2x!tpu.dma_semaphore, #tpu.memory_space<semaphore_mem>> -> memref<1x!tpu.dma_semaphore, #tpu.memory_space<semaphore_mem>>
    %11 = tpu.memref_squeeze %10 : memref<1x!tpu.dma_semaphore, #tpu.memory_space<semaphore_mem>> -> memref<!tpu.dma_semaphore, #tpu.memory_space<semaphore_mem>>
    tpu.wait_dma2 semaphore(%11 : memref<!tpu.dma_semaphore, #tpu.memory_space<semaphore_mem>>) src(%arg1 : memref<2x80x4096xf32, #tpu.memory_space<any>>) dst(%9 : memref<2x80x4096xf32, #tpu.memory_space<any>>)
    return
  }
}

</mosaic_0001>

<llo_original>
// kernel: tpu_custom_call.1
$region0: #{tpu_custom_call.1}
  #allocation0 [shape = 'u32[]', space=smem, size = 0x4, offset = 0x4, fixed_abs, tag = 'smem constant byte address 0x4 - core index']
  #allocation1 [shape = 'u32[144,128]{1,0:T(1,128)}', space=vmem, size = 0x12000, scoped, tag = 'internal scratch']
  #allocation2 [shape = 's32[2]{0}', space=sflag, size = 0x8, scoped, tag = 'scratch operand']
  #allocation3 [shape = 's32[]', space=sflag, size = 0x4, offset = 0, fixed_abs, tag = 'sflag constant byte address 0x0 - dummy sync flag']
  #allocation5 [shape = 's32[]', space=sflag, size = 0x4, offset = 0, fixed_abs, tag = 'sflag constant byte address 0x0 - dummy sync flag']
  %s0 = inlined_call_operand.hbm [shape: f32[2,48,4096], index: 0, kind: input, shape index: {}]
  %s1 = inlined_call_operand.hbm [shape: f32[2,80,4096], index: 1, kind: input, shape index: {}]
  %s2 = inlined_call_operand.hbm [shape: f32[2,128,4096], index: 2, kind: output, shape index: {}]
  %s3 = sld [smem:[#allocation0]]
  $region2: #{tpu_custom_call.1} parent=0
    _
  %s5 = ssub.s32 1, %s3
  %s6 = scalar_select 0, %s5, %s3
  $region1: #{tpu_custom_call.1} parent=0
    #allocation4 [shape = 'u32[3]{0}', space=smem, size = 0xc, scoped, tag = 'DMA stride descriptor']
    #allocation6 [shape = 'u32[3]{0}', space=smem, size = 0xc, scoped, tag = 'DMA stride descriptor']
    %s8 = sshll.u32 1, 14
    %s9 = sxor.u32 4294967295, %s8
    %13 = sst [smem:[#allocation4]] 24576
    %s14 = scalar_lea.smem [#allocation4], 1
    %15 = sst [smem:[%s14]] 65536
    %s16 = scalar_lea.smem [#allocation4], 2
    %17 = sst [smem:[%s16]] 1536
    %19 = dma.general %s0, 49152, %s2, [#allocation2], 131072, [#allocation4], 0, 0
    %s20 = scalar_lea.hbm %s2, 24576
    %s21 = scalar_lea.sflag [#allocation2], 1
    %s23 = sshll.u32 1, 14
    %s24 = sxor.u32 4294967295, %s23
    %28 = sst [smem:[#allocation6]] 40960
    %s29 = scalar_lea.smem [#allocation6], 1
    %30 = sst [smem:[%s29]] 65536
    %s31 = scalar_lea.smem [#allocation6], 2
    %32 = sst [smem:[%s31]] 2560
    %34 = dma.general %s1, 81920, %s20, %s21, 131072, [#allocation6], 0, 0
    %s35 = smul.u32 8, 2
    %s36 = smul.u32 %s35, 6
    %s37 = smul.u32 %s36, 32
    %s38 = sshll.u32 %s37, 4
    %39 = dma.done [#allocation2], %s38
    %s40 = smul.u32 %s35, 10
    %s41 = smul.u32 %s40, 32
    %s42 = sshll.u32 %s41, 4
    %43 = dma.done %s21, %s42
  %44 = vsyncmov [#allocation2]
  %s45 = vpop.sfrf %44
  %p46 = scmp.eq.s32.totalorder %s45, 0
  %p47 = pneg %p46
  %49 = shalt.err (%p47)
  %s50 = scalar_lea.sflag [#allocation2], 1
  %51 = vsyncmov %s50
  %s52 = vpop.sfrf %51
  %p53 = scmp.eq.s32.totalorder %s52, 0
  %p54 = pneg %p53
  %56 = shalt.err (%p54)

</llo_original>
